<compile_context>
chip_gen: v7x
topology: tpu7x:2x2x1
jax: 0.10.0
libtpu: 0.0.40
codegen_flags: <defaults>
</compile_context>

<pallas_src>
import functools
import math

import jax
import jax.numpy as jnp
from jax.experimental import pallas as pl
from jax.experimental.pallas import tpu as pltpu


_MAX_LANE_TILE = 65536   # cap on the lane extent of any single block
_MAX_ROW_PAD = 1024      # row-tile candidate used when sizing the lane tile


def _sublane_multiple(itemsize):
    # f32 -> 8, bf16 -> 16, int8/fp8 -> 32 (packed sublane granularity).
    return 8 * max(1, 4 // max(1, itemsize))


def _round_down(x, m):
    return max(m, (x // m) * m)


def _round_up(x, m):
    return ((x + m - 1) // m) * m


def _tpu_memory_profile():
    """(target input-block bytes, scoped-VMEM limit bytes) for this TPU generation.

    v5e/v6e (128 MiB VMEM): ~8 MiB blocks, 64 MiB scoped limit.
    v7x (64 MiB/TC but ~3.2 TB/s HBM): larger 12 MiB blocks -- per-step overhead
    would otherwise dominate -- with a tighter 44 MiB limit for headroom.
    Unknown / query failure: conservative 8 MiB blocks, 48 MiB limit.
    """
    vmem_cap = None
    try:
        vmem_cap = int(pltpu.get_tpu_info().vmem_capacity_bytes)
    except Exception:  # best-effort hardware query
        vmem_cap = None
    if vmem_cap is None:
        return 8 * 1024 * 1024, 48 * 1024 * 1024
    if vmem_cap <= 96 * 1024 * 1024:        # v7x-class TensorCore
        return 12 * 1024 * 1024, 44 * 1024 * 1024
    return 8 * 1024 * 1024, 64 * 1024 * 1024


def _pick_row_tiles(M, K, itemsize, target_bytes):
    """Tiles for the [M, K] reduce-last kernel: (tm rows, tk lanes)."""
    sub = _sublane_multiple(itemsize)
    m_pad = min(_round_up(M, sub), _MAX_ROW_PAD)
    # Lane (reduction) tile: full K when an m_pad-row slab fits the target, else the
    # largest 128-multiple chunk that does (capped so single blocks stay sane).
    tk = target_bytes // max(1, m_pad * itemsize)
    if tk >= K:
        tk = K
    else:
        tk = max(128, _round_down(min(tk, _MAX_LANE_TILE), 128))
    # Rows per block sized to fill the target with the chosen tk.
    tm = target_bytes // max(1, tk * itemsize)
    tm = M if tm >= M else max(sub, _round_down(tm, sub))
    return tm, tk


def _pick_mid_tiles(K, B, itemsize, target_bytes):
    """Tiles for the [A, K, B] reduce-middle kernel: (tk sublanes, tb lanes)."""
    sub = _sublane_multiple(itemsize)
    tb_cap = min(_MAX_LANE_TILE, max(128, target_bytes // max(1, sub * itemsize)))
    tb = B if B <= tb_cap else _round_down(tb_cap, 128)
    tk = target_bytes // max(1, tb * itemsize)
    tk = K if tk >= K else max(sub, _round_down(tk, sub))
    return tk, tb


# --------------------------------------------------------------------------
# Row-reduce kernel: x2d [M, K] -> per-row f32 partial sums over the lane axis.
# Grid = (n_split, keep_tiles, k_tiles_per_split); the f32 output block is the
# accumulator (resident across the trailing "arbitrary" reduction axis).
# --------------------------------------------------------------------------
def _mean_last_kernel(x_ref, o_ref, *, k_total, tk, kps, k_tiles, need_mask, split):
    k = pl.program_id(2)

    @pl.when(k == 0)
    def _():
        o_ref[...] = jnp.zeros_like(o_ref)

    # Global block index along K (the leading grid dim is the 2-way core split).
    kg = pl.program_id(0) * kps + k if split else k

    def _accum(masked):
        x = x_ref[...].astype(jnp.float32)
        if masked:
            col = jax.lax.broadcasted_iota(jnp.int32, x.shape, 1) + kg * tk
            x = jnp.where(col < k_total, x, 0.0)
        # Per-step lane (XLU) reduce; XLU has its own issue slot and this kernel is
        # HBM-bound, so it stays off the critical path.
        o_ref[...] += jnp.sum(x, axis=-1, keepdims=True).reshape(o_ref.shape)

    if not need_mask and not split:
        _accum(False)
    else:
        # Steady-state blocks take the unmasked fast path; only the final (possibly
        # partial) block pays the iota+select.  Clamped duplicate blocks from an
        # uneven core split (kg >= k_tiles) contribute nothing.
        @pl.when(kg < k_tiles - 1)
        def _():
            _accum(False)

        @pl.when(kg == k_tiles - 1)
        def _():
            _accum(need_mask)


def _mean_last_2d(x2d, target_bytes, vmem_limit):
    """Mean over the last axis of [M, K]; returns shape (M,) in x2d.dtype."""
    M, K = x2d.shape
    itemsize = x2d.dtype.itemsize
    tm, tk = _pick_row_tiles(M, K, itemsize, target_bytes)
    keep_tiles = pl.cdiv(M, tm)
    k_tiles = pl.cdiv(K, tk)
    need_mask = (K % tk) != 0

    # Small keep axis (global-average-pool / reduce-all): split the reduction axis
    # 2-ways over a leading "parallel" grid dim so both v7x TensorCores stream HBM.
    n_split = 2 if (keep_tiles == 1 and k_tiles >= 4) else 1
    kps = pl.cdiv(k_tiles, n_split)

    if n_split > 1:
        def in_map(s, i, k):  # clamp so uneven splits never index past the array
            return (i, jnp.minimum(s * kps + k, k_tiles - 1))
    else:
        def in_map(s, i, k):
            return (i, k)

    kernel = functools.partial(
        _mean_last_kernel, k_total=K, tk=tk, kps=kps, k_tiles=k_tiles,
        need_mask=need_mask, split=n_split > 1)

    partial = pl.pallas_call(
        kernel,
        out_shape=jax.ShapeDtypeStruct((n_split, M, 1), jnp.float32),
        grid_spec=pltpu.PrefetchScalarGridSpec(
            num_scalar_prefetch=0,
            grid=(n_split, keep_tiles, kps),
            in_specs=[pl.BlockSpec((tm, tk), in_map)],
            out_specs=pl.BlockSpec((1, tm, 1), lambda s, i, k: (s, i, 0)),
        ),
        compiler_params=pltpu.CompilerParams(
            dimension_semantics=("parallel", "parallel", "arbitrary"),
            vmem_limit_bytes=vmem_limit),
        cost_estimate=pl.CostEstimate(
            flops=M * K, transcendentals=0,
            bytes_accessed=M * K * itemsize + n_split * M * 4),
    )(x2d)

    # Tiny combine (n_split * M floats, negligible vs the M*K input traffic):
    # per-split partial sums -> mean in the input dtype.
    return (jnp.sum(partial[:, :, 0], axis=0) * (1.0 / K)).astype(x2d.dtype)


# --------------------------------------------------------------------------
# Middle-reduce kernel: x3d [A, K, B] -> mean over the middle (sublane) axis.
# Kept axes live on the leading "parallel" grid dims and on lanes, so the
# output stores are lane-dense.  A == 1 covers the reduced-axes-leading case.
# --------------------------------------------------------------------------
def _mean_mid_kernel(x_ref, o_ref, acc_ref, *, k_total, tk, need_mask, inv_k):
    k = pl.program_id(2)

    @pl.when(k == 0)
    def _():
        acc_ref[...] = jnp.zeros_like(acc_ref)

    def _accum(masked):
        x = x_ref[0].astype(jnp.float32)                   # (tk, tb)
        if masked:
            row = jax.lax.broadcasted_iota(jnp.int32, x.shape, 0) + k * tk
            x = jnp.where(row < k_total, x, 0.0)
        if tk % 8 == 0:
            # Free view (splits the sublane dim at native (8,128) tile granularity):
            # the per-step reduce is pure VALU adds across vregs; the single
            # cross-sublane XLU reduce happens once, in the finalize.
            acc_ref[...] += jnp.sum(x.reshape(tk // 8, 8, x.shape[-1]), axis=0)
        else:
            acc_ref[0:1, :] += jnp.sum(x, axis=0, keepdims=True)

    last = pl.num_programs(2) - 1
    if need_mask:
        @pl.when(k < last)
        def _():
            _accum(False)

        @pl.when(k == last)
        def _():
            _accum(True)
    else:
        _accum(False)

    @pl.when(k == last)
    def _():
        s = jnp.sum(acc_ref[...], axis=0, keepdims=True)   # one 8-sublane reduce
        o_ref[...] = (s * inv_k).reshape(o_ref.shape).astype(o_ref.dtype)


def _mean_mid_3d(x3d, target_bytes, vmem_limit):
    """Mean over the middle axis of [A, K, B]; returns (A, B) in x3d.dtype."""
    A, K, B = x3d.shape
    itemsize = x3d.dtype.itemsize
    tk, tb = _pick_mid_tiles(K, B, itemsize, target_bytes)
    need_mask = (K % tk) != 0

    # TODO(synk): when K*B is small, batch several A slices per block to amortize
    # the per-grid-step overhead (currently one A slice per step).
    kernel = functools.partial(_mean_mid_kernel, k_total=K, tk=tk,
                               need_mask=need_mask, inv_k=1.0 / K)
    out = pl.pallas_call(
        kernel,
        out_shape=jax.ShapeDtypeStruct((A, 1, B), x3d.dtype),
        grid_spec=pltpu.PrefetchScalarGridSpec(
            num_scalar_prefetch=0,
            grid=(A, pl.cdiv(B, tb), pl.cdiv(K, tk)),
            in_specs=[pl.BlockSpec((1, tk, tb), lambda a, j, k: (a, k, j))],
            out_specs=pl.BlockSpec((1, 1, tb), lambda a, j, k: (a, 0, j)),
            scratch_shapes=[pltpu.VMEM((8, tb), jnp.float32)],
        ),
        compiler_params=pltpu.CompilerParams(
            dimension_semantics=("parallel", "parallel", "arbitrary"),
            vmem_limit_bytes=vmem_limit),
        cost_estimate=pl.CostEstimate(
            flops=A * K * B, transcendentals=0,
            bytes_accessed=A * K * B * itemsize + A * B * itemsize),
    )(x3d)
    return out.reshape(A, B)


# --------------------------------------------------------------------------
# Wrapper: torch.mean(x, dim, keepdim) semantics.
# --------------------------------------------------------------------------
def mean_pallas(x, dim, keepdim=False):
    ndim = x.ndim
    dims = (dim,) if isinstance(dim, int) else tuple(dim)
    if not dims:
        # NOTE: torch.mean with an empty dim tuple historically reduced over all
        # dims; this module is always constructed with explicit dims, keep no-op.
        return x
    dims = tuple(sorted(set(d % ndim for d in dims)))
    keep = tuple(d for d in range(ndim) if d not in dims)
    keep_shape = tuple(x.shape[d] for d in keep)
    K = math.prod(x.shape[d] for d in dims)

    target_bytes, vmem_limit = _tpu_memory_profile()
    contiguous = dims == tuple(range(dims[0], dims[-1] + 1))

    if not keep:
        # Reduce over everything.
        out_flat = _mean_last_2d(x.reshape(1, K), target_bytes, vmem_limit)
    elif contiguous and dims[-1] == ndim - 1:
        # Reduced axes trailing: [M, K] view, zero data movement.
        M = math.prod(keep_shape)
        out_flat = _mean_last_2d(x.reshape(M, K), target_bytes, vmem_limit)
    elif contiguous:
        # Reduced axes leading or in the middle: [A, K, B] view, zero data movement,
        # lane-dense output stores.
        A = math.prod(x.shape[:dims[0]])
        B = math.prod(x.shape[dims[-1] + 1:])
        out_flat = _mean_mid_3d(x.reshape(A, K, B), target_bytes, vmem_limit)
    else:
        # TODO(synk): multi-group interleaved reduce dims still pay a wrapper
        # transpose (an extra HBM pass); fold it into an N-D grid index_map.
        M = math.prod(keep_shape)
        xt = jnp.transpose(x, keep + dims)
        out_flat = _mean_last_2d(xt.reshape(M, K), target_bytes, vmem_limit)

    out_shape = (tuple(1 if d in dims else x.shape[d] for d in range(ndim))
                 if keepdim else keep_shape)
    return out_flat.reshape(out_shape)


if __name__ == "__main__":
    key = jax.random.PRNGKey(0)
    x = jax.random.normal(key, (2, 4, 16, 16), dtype=jnp.float32)

    # Primary config mirroring Mean(dim=(2, 3), keepdim=False): global spatial mean.
    out = jax.block_until_ready(mean_pallas(x, dim=(2, 3), keepdim=False))
    ref = jnp.mean(x, axis=(2, 3))
    assert out.shape == ref.shape, (out.shape, ref.shape)
    assert jnp.allclose(out, ref, atol=1e-5, rtol=1e-5)

    # keepdim variant.
    out2 = jax.block_until_ready(mean_pallas(x, dim=(2, 3), keepdim=True))
    ref2 = jnp.mean(x, axis=(2, 3), keepdims=True)
    assert out2.shape == ref2.shape and jnp.allclose(out2, ref2, atol=1e-5, rtol=1e-5)

    # Leading-axes reduction exercises the lane-dense middle kernel with A == 1.
    out3 = jax.block_until_ready(mean_pallas(x, dim=(0, 1)))
    ref3 = jnp.mean(x, axis=(0, 1))
    assert out3.shape == ref3.shape and jnp.allclose(out3, ref3, atol=1e-5, rtol=1e-5)

    # Middle-axis reduction: handled without any wrapper transpose.
    out4 = jax.block_until_ready(mean_pallas(x, dim=1))
    ref4 = jnp.mean(x, axis=1)
    assert out4.shape == ref4.shape and jnp.allclose(out4, ref4, atol=1e-5, rtol=1e-5)

    # Larger global-average-pool exercises the multi-block reduction path:
    # masked K tail + the 2-way reduction split (megacore on v7x, sequential else).
    xl = jax.random.normal(jax.random.PRNGKey(0), (2, 4, 640, 640), dtype=jnp.float32)
    out5 = jax.block_until_ready(mean_pallas(xl, dim=(2, 3)))
    ref5 = jnp.mean(xl, axis=(2, 3))
    assert out5.shape == ref5.shape and jnp.allclose(out5, ref5, atol=2e-5, rtol=1e-5)

    print("KERNEL_OK")
</pallas_src>

<mosaic_0001>
module attributes {stable_mosaic.version = 11 : i64} {
  func.func @_mean_last_kernel(%arg0: i32, %arg1: i32, %arg2: i32, %arg3: memref<8x256xf32, #tpu.memory_space<vmem>>, %arg4: memref<1x8x1xf32, #tpu.memory_space<vmem>>) attributes {dimension_semantics = [#tpu.dimension_semantics<parallel>, #tpu.dimension_semantics<parallel>, #tpu.dimension_semantics<arbitrary>], iteration_bounds = array<i64: 1, 1, 1>, scalar_prefetch = 0 : i64, scratch_operands = 0 : i64, tpu.core_type = #tpu.core_type<tc>, window_params = [{transform_indices = @transform_0, window_bounds = array<i64: 8, 256>}, {transform_indices = @transform_1, window_bounds = array<i64: 1, 8, 1>}]} {
    %c0_i32 = arith.constant 0 : i32
    %0 = arith.cmpi eq, %arg2, %c0_i32 : i32
    %1 = arith.extui %0 : i1 to i32
    %c0_i32_0 = arith.constant 0 : i32
    %2 = arith.cmpi ne, %1, %c0_i32_0 : i32
    scf.if %2 {
      %cst_8 = arith.constant 0.000000e+00 : f32
      %10 = vector.broadcast %cst_8 : f32 to vector<1x8x1xf32>
      %c0_9 = arith.constant 0 : index
      %c0_10 = arith.constant 0 : index
      %c0_11 = arith.constant 0 : index
      %11 = vector.load %arg4[%c0_9, %c0_10, %c0_11] : memref<1x8x1xf32, #tpu.memory_space<vmem>>, vector<1x8x1xf32>
      tpu.vector_store %arg4[%c0_9, %c0_10, %c0_11], %10 {strides = array<i32>} : memref<1x8x1xf32, #tpu.memory_space<vmem>>, vector<1x8x1xf32>,
    } else {
    }
    %c0 = arith.constant 0 : index
    %c0_1 = arith.constant 0 : index
    %3 = vector.load %arg3[%c0, %c0_1] : memref<8x256xf32, #tpu.memory_space<vmem>>, vector<8x256xf32>
    %c0_2 = arith.constant 0 : index
    %c0_3 = arith.constant 0 : index
    %c0_4 = arith.constant 0 : index
    %4 = vector.load %arg4[%c0_2, %c0_3, %c0_4] : memref<1x8x1xf32, #tpu.memory_space<vmem>>, vector<1x8x1xf32>
    %cst = arith.constant dense<0.000000e+00> : vector<8xf32>
    %5 = vector.multi_reduction <add>, %3, %cst [1] : vector<8x256xf32> to vector<8xf32>
    %6 = vector.shape_cast %5 : vector<8xf32> to vector<8x1xf32>
    %7 = vector.shape_cast %6 : vector<8x1xf32> to vector<1x8x1xf32>
    %8 = arith.addf %4, %7 : vector<1x8x1xf32>
    %c0_5 = arith.constant 0 : index
    %c0_6 = arith.constant 0 : index
    %c0_7 = arith.constant 0 : index
    %9 = vector.load %arg4[%c0_5, %c0_6, %c0_7] : memref<1x8x1xf32, #tpu.memory_space<vmem>>, vector<1x8x1xf32>
    tpu.vector_store %arg4[%c0_5, %c0_6, %c0_7], %8 {strides = array<i32>} : memref<1x8x1xf32, #tpu.memory_space<vmem>>, vector<1x8x1xf32>,
    return
  }
  func.func @transform_0(%arg0: i32, %arg1: i32, %arg2: i32) -> (i32, i32) {
    %c0_i32 = arith.constant 0 : i32
    return %arg1, %arg2 : i32, i32
  }
  func.func @transform_1(%arg0: i32, %arg1: i32, %arg2: i32) -> (i32, i32, i32) {
    %c0_i32 = arith.constant 0 : i32
    %c0_i32_0 = arith.constant 0 : i32
    return %arg0, %arg1, %c0_i32 : i32, i32, i32
  }
}

</mosaic_0001>

<llo_original>
// kernel: tpu_custom_call.1
$region0: #{tpu_custom_call.1}
  #allocation0 [shape = 'u32[]', space=smem, size = 0x4, offset = 0x4, fixed_abs, tag = 'smem constant byte address 0x4 - core index']
  #allocation1 [shape = 'u32[144,128]{1,0:T(1,128)}', space=vmem, size = 0x12000, scoped, tag = 'internal scratch']
  %s0 = inlined_call_operand.hbm [shape: f32[8,256], index: 0, kind: input, shape index: {}]
  %s1 = inlined_call_operand.vmem [shape: f32[1,8,1], index: 1, kind: output, shape index: {}]
  %s2 = sld [smem:[#allocation0]]
  $region22: #{tpu_custom_call.1} parent=0
    _
  %s4 = ssub.s32 1, %s2
  %s5 = scalar_select 0, %s4, %s2
  $region1: #{tpu_custom_call.1} parent=0
    #allocation2 [shape = 'u8[8192]{0}', space=vmem, size = 0x2000, scoped, tag = 'input window, operand 0, single buffered']
    #allocation3 [shape = 's32[1]{0}', space=sflag, size = 0x4, scoped, tag = 'scoped memory for tpu_custom_call.1']
    %6 = vsyncpa [#allocation3], 0
    // Predicated region
    $region2: #{tpu_custom_call.1} parent=1 // pred_check
      _
    $region3: #{tpu_custom_call.1} parent=1 // pred_check_branch
      %8 = sbr.rel (0) target = $region5
    $region4: #{tpu_custom_call.1} parent=1 // pred_region
      %s10 = ssub.s32 256, 256
      %11 = vsyncadd [#allocation3], %s10
      %s13 = sshll.u32 [#allocation2], 4
      %s14 = int_to_ptr.vmem [resolvable:$true] %s13
      %16 = dma.hbm_to_vmem [thread:$0]  %s0, 256, %s14, [#allocation3]
    $region5: #{tpu_custom_call.1} parent=1 // pred_fallthru
      _
    // Predicated region
    $region6: #{tpu_custom_call.1} parent=1 // pred_check
      _
    $region7: #{tpu_custom_call.1} parent=1 // pred_check_branch
      %18 = sbr.rel (0) target = $region9
    $region8: #{tpu_custom_call.1} parent=1 // pred_region
      %19 = dma.done [#allocation3], 256
    $region9: #{tpu_custom_call.1} parent=1 // pred_fallthru
      _
    %p20 = scmp.eq.s32.totalorder 0, 0
    // Predicated region
    $region10: #{tpu_custom_call.1} parent=1 // pred_check
      %p21 = pneg %p20
    $region11: #{tpu_custom_call.1} parent=1 // pred_check_branch
      %23 = sbr.rel (%p21) target = $region13
    $region12: #{tpu_custom_call.1} parent=1 // pred_region
      %vm24 = vcmask 7168
      %25 = vst.msk [vmem:[%s1] sm:$0xff] %vm24, 0.0
    $region13: #{tpu_custom_call.1} parent=1 // pred_fallthru
      _
    %v26 = vld [vmem:[#allocation2] sm:$0xff]
    %v27 = vld [vmem:[#allocation2 + $0x8] sm:$0xff]
    %v28 = vld [vmem:[%s1] sm:$0xff]
    %v29 = vadd.f32 %v26, %v27
    %30 = vadd.xlane.f32.xlu0 %v29
    %v31 = vpop.xlane.xlu0 %30
    %v32 = vadd.f32 %v28, %v31
    %vm33 = vcmask 7168
    %34 = vst.msk [vmem:[%s1] sm:$0xff] %vm33, %v32
    // Predicated region
    $region14: #{tpu_custom_call.1} parent=1 // pred_check
      _
    $region15: #{tpu_custom_call.1} parent=1 // pred_check_branch
      %36 = sbr.rel (0) target = $region17
    $region16: #{tpu_custom_call.1} parent=1 // pred_region
      _
    $region17: #{tpu_custom_call.1} parent=1 // pred_fallthru
      _
    // Predicated region
    $region18: #{tpu_custom_call.1} parent=1 // pred_check
      _
    $region19: #{tpu_custom_call.1} parent=1 // pred_check_branch
      %38 = sbr.rel (0) target = $region21
    $region20: #{tpu_custom_call.1} parent=1 // pred_region
      _
    $region21: #{tpu_custom_call.1} parent=1 // pred_fallthru
      _
    %39 = vsyncpa [#allocation3], 1

</llo_original>
